<compile_context>
chip_gen: v7x
topology: tpu7x:2x2x1
jax: 0.10.0
libtpu: 0.0.40
codegen_flags: <defaults>
</compile_context>

<pallas_src>
import functools

import jax
import jax.numpy as jnp
from jax import lax
from jax.experimental import pallas as pl
from jax.experimental.pallas import tpu as pltpu


def _relic_tt_kernel(xn_ref, xpn_ref, out_ref, *, block_rows, col_chunk,
                     n_valid, n_pad, inv_n, needs_mask):
    """Grid step i handles rows [i*TB, (i+1)*TB) of both softmax(sim, -1)
    (for log_p) and softmax(sim.T, -1) (for the target t), fully fused."""
    i = pl.program_id(0)
    row0 = pl.multiple_of(i * block_rows, block_rows)

    # Row block of both (pre-normalized, bf16) views.
    xn_blk = xn_ref[pl.ds(row0, block_rows), :]     # (TB, D)
    xpn_blk = xpn_ref[pl.ds(row0, block_rows), :]   # (TB, D)

    # Contract on D of both operands (flash-attn-style q @ k.T): both "sim rows"
    # and "sim.T rows" are plain MXU matmuls, no XLU transpose of an NxN tile.
    contract_d = (((1,), (1,)), ((), ()))
    num_chunks = n_pad // col_chunk

    def chunk_body(c, carry):
        denom_p, denom_t, w = carry
        c0 = pl.multiple_of(c * col_chunk, col_chunk)
        xpn_c = xpn_ref[pl.ds(c0, col_chunk), :]    # (C, D)
        xn_c = xn_ref[pl.ds(c0, col_chunk), :]      # (C, D)
        # sim[a, c0:c0+C]   -> rows of softmax(sim, -1)
        sim = lax.dot_general(xn_blk, xpn_c, contract_d,
                              preferred_element_type=jnp.float32)
        # sim.T[a, c0:c0+C] -> rows of softmax(sim.T, -1)
        sim_t = lax.dot_general(xpn_blk, xn_c, contract_d,
                                preferred_element_type=jnp.float32)
        # Cosine similarity is bounded in [-1, 1] -> exp() is safe without the
        # usual row-max shift (keep the shift if sim_func is ever unbounded).
        e_p = jnp.exp(sim)
        e_t = jnp.exp(sim_t)
        if needs_mask:
            col = lax.broadcasted_iota(jnp.int32, (block_rows, col_chunk), 1) + c0
            valid = (col < n_valid).astype(jnp.float32)
            e_p = e_p * valid
            e_t = e_t * valid
        denom_p = denom_p + jnp.sum(e_p, axis=-1, keepdims=True)
        denom_t = denom_t + jnp.sum(e_t, axis=-1, keepdims=True)
        w = w + jnp.sum(e_t * (sim_t - sim), axis=-1, keepdims=True)
        return denom_p, denom_t, w

    zero = jnp.zeros((block_rows, 1), jnp.float32)
    init = (zero, zero, zero)
    if num_chunks == 1:
        denom_p, denom_t, w = chunk_body(0, init)
    else:
        denom_p, denom_t, w = lax.fori_loop(0, num_chunks, chunk_body, init,
                                            unroll=num_chunks <= 8)

    # Per-row KL(t || p) = w / denom_t + log(denom_p) - log(denom_t).
    kl_rows = (w * pl.reciprocal(denom_t, approx=True)
               + jnp.log(denom_p) - jnp.log(denom_t))                 # (TB, 1)
    if needs_mask:
        row = lax.broadcasted_iota(jnp.int32, (block_rows, 1), 0) + row0
        kl_rows = jnp.where(row < n_valid, kl_rows, 0.0)

    # 'batchmean' divisor is N (true batch size).  Lane-dense partial-sum block;
    # the wrapper reduces across row blocks, keeping this grid axis "parallel".
    partial = jnp.sum(kl_rows) * inv_n
    out_ref[...] = jnp.full(out_ref.shape, partial, dtype=out_ref.dtype)


def _normalize(v, mxu_dtype):
    """Cosine normalization with the PyTorch eps clamp, cast to the MXU dtype."""
    v = v.astype(jnp.float32)
    # v / max(||v||, 1e-8) == v * rsqrt(max(||v||^2, 1e-16))
    inv = lax.rsqrt(jnp.maximum(jnp.sum(v * v, axis=-1, keepdims=True), 1e-16))
    return (v * inv).astype(mxu_dtype)


def _round_up(x, m):
    return ((x + m - 1) // m) * m


def _choose_tiles(n, row_align=16, max_block_rows=256, max_col_chunk=2048):
    """Row block (TB), padded N, and epilogue column chunk.

    Pads N up to a multiple of TB (never falls back to one giant block); keeps
    TB at 256 for MXU weight amortization and shrinks the epilogue column chunk
    instead of TB when VMEM is the constraint.
    """
    # TODO(synk): make TB generation-aware (128 suffices on v5e's 128-wide MXU).
    if n <= max_block_rows:
        tb = _round_up(max(n, row_align), row_align)
        return tb, tb, tb                      # single block, single chunk
    tb = max_block_rows
    n_pad = _round_up(n, tb)
    if n_pad <= max_col_chunk:
        cc = n_pad
    else:
        cc = max_col_chunk
        while n_pad % cc:
            cc -= tb                           # n_pad is a multiple of tb -> terminates
    return tb, n_pad, cc


def relic_tt_loss(x, x_pair, *, max_block_rows=256):
    """x, x_pair: (N, D) arrays.  Returns the scalar RELIC-TT loss (float32).

    The normalized operands are fed to the MXU in bf16 (f32 accumulation), so
    results deviate from a pure-f32 reference by O(1e-3) absolute.
    """
    assert x.shape == x_pair.shape and x.ndim == 2
    n, d = x.shape
    mxu_dtype = jnp.bfloat16                   # bf16 MXU operands even for f32 inputs
    tb, n_pad, cc = _choose_tiles(n, row_align=16, max_block_rows=max_block_rows)
    grid = n_pad // tb
    needs_mask = n_pad != n

    # One fused XLA pass in the wrapper; kernel sees pre-normalized operands.
    xn = _normalize(x, mxu_dtype)
    xpn = _normalize(x_pair, mxu_dtype)
    if needs_mask:
        pad = ((0, n_pad - n), (0, 0))
        xn = jnp.pad(xn, pad)
        xpn = jnp.pad(xpn, pad)

    # VMEM budget: resident operands (pipeline may double-buffer them) + live
    # (TB, C) f32 temporaries, capped below physical capacity with headroom.
    operand_bytes = 2 * 2 * n_pad * d * jnp.dtype(mxu_dtype).itemsize
    slab_bytes = 6 * tb * cc * 4
    try:
        vmem_cap = pltpu.get_tpu_info().vmem_capacity_bytes
    except Exception:                          # conservative fallback (v7x-sized)
        vmem_cap = 64 * 1024 * 1024
    vmem_limit = int(max(32 * 1024 * 1024,
                         min(2 * (operand_bytes + slab_bytes) + (1 << 20),
                             vmem_cap - 12 * 1024 * 1024)))

    cost = pl.CostEstimate(
        flops=4 * n_pad * n_pad * d + 8 * n_pad * n_pad,     # 2 matmuls + fused epilogue
        transcendentals=2 * n_pad * n_pad + 4 * n_pad,       # exps + per-row log/recip
        bytes_accessed=2 * n_pad * d * jnp.dtype(mxu_dtype).itemsize + grid * 8 * 128 * 4,
    )

    kernel = functools.partial(
        _relic_tt_kernel, block_rows=tb, col_chunk=cc, n_valid=n, n_pad=n_pad,
        inv_n=1.0 / n, needs_mask=needs_mask)

    # TODO(synk): add pipeline_mode=pl.Buffered(1) on the constant-index resident
    # inputs (drops the second pipeline buffer on v7x) once single-buffering is
    # confirmed available in the deployed jax version.
    partials = pl.pallas_call(
        kernel,
        out_shape=jax.ShapeDtypeStruct((grid, 8, 128), jnp.float32),
        grid_spec=pltpu.PrefetchScalarGridSpec(
            num_scalar_prefetch=0,
            grid=(grid,),
            in_specs=[
                # Full arrays, constant block index -> resident across the grid.
                pl.BlockSpec((n_pad, d), lambda i: (0, 0)),
                pl.BlockSpec((n_pad, d), lambda i: (0, 0)),
            ],
            out_specs=pl.BlockSpec((1, 8, 128), lambda i: (i, 0, 0)),
        ),
        compiler_params=pltpu.CompilerParams(
            # Independent row blocks (per-block partial outputs) -> megacore-
            # shardable on v7x; neutral on v5e/v6e.
            dimension_semantics=("parallel",),
            vmem_limit_bytes=vmem_limit,
        ),
        cost_estimate=cost,
    )(xn, xpn)

    return jnp.sum(partials[:, 0, 0])


def _reference_loss(x, x_pair):
    """Pure-JAX reference mirroring the PyTorch forward (f32 throughout)."""
    x = x.astype(jnp.float32)
    x_pair = x_pair.astype(jnp.float32)
    eps = 1e-8
    xn = x / jnp.maximum(jnp.linalg.norm(x, axis=-1, keepdims=True), eps)
    xpn = x_pair / jnp.maximum(jnp.linalg.norm(x_pair, axis=-1, keepdims=True), eps)
    sim = xn @ xpn.T
    log_p = jax.nn.log_softmax(sim, axis=-1)
    t = jax.nn.softmax(sim.T, axis=-1)
    log_t = jax.nn.log_softmax(sim.T, axis=-1)
    return jnp.sum(t * (log_t - log_p)) / sim.shape[0]


if __name__ == "__main__":
    key = jax.random.PRNGKey(0)
    k1, k2 = jax.random.split(key)
    N, D = 8, 32  # batch of 8 representations, hidden dim 32
    x = jax.random.normal(k1, (N, D), dtype=jnp.float32)
    x_pair = jax.random.normal(k2, (N, D), dtype=jnp.float32)

    loss = relic_tt_loss(x, x_pair)
    jax.block_until_ready(loss)

    ref = _reference_loss(x, x_pair)
    # bf16 MXU operands + approx reciprocal -> loosened tolerance vs f32 reference.
    assert jnp.allclose(loss, ref, atol=3e-3, rtol=3e-2), (loss, ref)
    print("KERNEL_OK")
</pallas_src>

<mosaic_0001>
module attributes {stable_mosaic.version = 11 : i64} {
  func.func @_relic_tt_kernel(%arg0: i32, %arg1: memref<16x32xbf16, #tpu.memory_space<vmem>>, %arg2: memref<16x32xbf16, #tpu.memory_space<vmem>>, %arg3: memref<1x8x128xf32, #tpu.memory_space<vmem>>) attributes {dimension_semantics = [#tpu.dimension_semantics<parallel>], iteration_bounds = array<i64: 1>, scalar_prefetch = 0 : i64, scratch_operands = 0 : i64, tpu.core_type = #tpu.core_type<tc>, window_params = [{pipeline_mode = #tpu.pipeline_mode<synchronous>, transform_indices = @transform_0, window_bounds = array<i64: 16, 32>}, {pipeline_mode = #tpu.pipeline_mode<synchronous>, transform_indices = @transform_1, window_bounds = array<i64: 16, 32>}, {transform_indices = @transform_2, window_bounds = array<i64: 1, 8, 128>}]} {
    %c16_i32 = arith.constant 16 : i32
    %0 = arith.muli %arg0, %c16_i32 : i32
    %1 = tpu.assume_multiple %0, 16 : i32
    %2 = arith.index_cast %1 : i32 to index
    %c0 = arith.constant 0 : index
    %3 = vector.load %arg1[%2, %c0] : memref<16x32xbf16, #tpu.memory_space<vmem>>, vector<16x32xbf16>
    %4 = arith.index_cast %1 : i32 to index
    %c0_0 = arith.constant 0 : index
    %5 = vector.load %arg2[%4, %c0_0] : memref<16x32xbf16, #tpu.memory_space<vmem>>, vector<16x32xbf16>
    %cst = arith.constant 0.000000e+00 : f32
    %6 = vector.broadcast %cst : f32 to vector<16x1xf32>
    %c0_i32 = arith.constant 0 : i32
    %7 = tpu.assume_multiple %c0_i32, 16 : i32
    %8 = arith.index_cast %7 : i32 to index
    %c0_1 = arith.constant 0 : index
    %9 = vector.load %arg2[%8, %c0_1] : memref<16x32xbf16, #tpu.memory_space<vmem>>, vector<16x32xbf16>
    %10 = arith.index_cast %7 : i32 to index
    %c0_2 = arith.constant 0 : index
    %11 = vector.load %arg1[%10, %c0_2] : memref<16x32xbf16, #tpu.memory_space<vmem>>, vector<16x32xbf16>
    %cst_3 = arith.constant dense<0.000000e+00> : vector<16x16xf32>
    %12 = tpu.matmul %3, %9, %cst_3 {dimension_numbers = #tpu.dot_dimension_numbers<[1], [1], [0], [0], [0, 0, 1, 0], [], []>} : vector<16x32xbf16>, vector<16x32xbf16>, vector<16x16xf32> -> vector<16x16xf32>
    %cst_4 = arith.constant dense<0.000000e+00> : vector<16x16xf32>
    %13 = tpu.matmul %5, %11, %cst_4 {dimension_numbers = #tpu.dot_dimension_numbers<[1], [1], [0], [0], [0, 0, 1, 0], [], []>} : vector<16x32xbf16>, vector<16x32xbf16>, vector<16x16xf32> -> vector<16x16xf32>
    %14 = math.exp %12 : vector<16x16xf32>
    %15 = math.exp %13 : vector<16x16xf32>
    %16 = tpu.iota {dimensions = array<i32: 1>} : vector<16x16xi32>
    %17 = vector.broadcast %7 : i32 to vector<16x16xi32>
    %18 = arith.addi %16, %17 : vector<16x16xi32>
    %c8_i32 = arith.constant 8 : i32
    %19 = vector.broadcast %c8_i32 : i32 to vector<16x16xi32>
    %20 = arith.cmpi slt, %18, %19 : vector<16x16xi32>
    %21 = arith.extui %20 : vector<16x16xi1> to vector<16x16xi32>
    %22 = arith.sitofp %21 : vector<16x16xi32> to vector<16x16xf32>
    %23 = arith.mulf %14, %22 : vector<16x16xf32>
    %24 = arith.mulf %15, %22 : vector<16x16xf32>
    %cst_5 = arith.constant dense<0.000000e+00> : vector<16xf32>
    %25 = vector.multi_reduction <add>, %23, %cst_5 [1] : vector<16x16xf32> to vector<16xf32>
    %26 = vector.shape_cast %25 : vector<16xf32> to vector<16x1xf32>
    %27 = arith.addf %6, %26 : vector<16x1xf32>
    %cst_6 = arith.constant dense<0.000000e+00> : vector<16xf32>
    %28 = vector.multi_reduction <add>, %24, %cst_6 [1] : vector<16x16xf32> to vector<16xf32>
    %29 = vector.shape_cast %28 : vector<16xf32> to vector<16x1xf32>
    %30 = arith.addf %6, %29 : vector<16x1xf32>
    %31 = arith.subf %13, %12 : vector<16x16xf32>
    %32 = arith.mulf %24, %31 : vector<16x16xf32>
    %cst_7 = arith.constant dense<0.000000e+00> : vector<16xf32>
    %33 = vector.multi_reduction <add>, %32, %cst_7 [1] : vector<16x16xf32> to vector<16xf32>
    %34 = vector.shape_cast %33 : vector<16xf32> to vector<16x1xf32>
    %35 = arith.addf %6, %34 : vector<16x1xf32>
    %36 = tpu.reciprocal %30 {approx = true} : vector<16x1xf32> -> vector<16x1xf32>
    %37 = arith.mulf %35, %36 : vector<16x1xf32>
    %38 = math.log %27 : vector<16x1xf32>
    %39 = arith.addf %37, %38 : vector<16x1xf32>
    %40 = math.log %30 : vector<16x1xf32>
    %41 = arith.subf %39, %40 : vector<16x1xf32>
    %42 = tpu.iota {dimensions = array<i32: 0>} : vector<16x1xi32>
    %43 = vector.broadcast %1 : i32 to vector<16x1xi32>
    %44 = arith.addi %42, %43 : vector<16x1xi32>
    %c8_i32_8 = arith.constant 8 : i32
    %45 = vector.broadcast %c8_i32_8 : i32 to vector<16x1xi32>
    %46 = arith.cmpi slt, %44, %45 : vector<16x1xi32>
    %cst_9 = arith.constant 0.000000e+00 : f32
    %47 = vector.broadcast %cst_9 : f32 to vector<16x1xf32>
    %48 = arith.select %46, %41, %47 : vector<16x1xi1>, vector<16x1xf32>
    %49 = vector.shape_cast %48 : vector<16x1xf32> to vector<1x16x1xf32>
    %cst_10 = arith.constant dense<0.000000e+00> : vector<1xf32>
    %50 = vector.multi_reduction <add>, %49, %cst_10 [1, 2] : vector<1x16x1xf32> to vector<1xf32>
    %51 = vector.shape_cast %50 : vector<1xf32> to vector<1x1x1xf32>
    %52 = vector.extract %51[0, 0, 0] : f32 from vector<1x1x1xf32>
    %cst_11 = arith.constant 1.250000e-01 : f32
    %53 = arith.mulf %52, %cst_11 : f32
    %54 = vector.broadcast %53 : f32 to vector<1x8x128xf32>
    %c0_12 = arith.constant 0 : index
    %c0_13 = arith.constant 0 : index
    %c0_14 = arith.constant 0 : index
    %55 = vector.load %arg3[%c0_12, %c0_13, %c0_14] : memref<1x8x128xf32, #tpu.memory_space<vmem>>, vector<1x8x128xf32>
    tpu.vector_store %arg3[%c0_12, %c0_13, %c0_14], %54 {strides = array<i32>} : memref<1x8x128xf32, #tpu.memory_space<vmem>>, vector<1x8x128xf32>,
    return
  }
  func.func @transform_0(%arg0: i32) -> (i32, i32) {
    %c0_i32 = arith.constant 0 : i32
    %c0_i32_0 = arith.constant 0 : i32
    %c0_i32_1 = arith.constant 0 : i32
    return %c0_i32, %c0_i32_0 : i32, i32
  }
  func.func @transform_1(%arg0: i32) -> (i32, i32) {
    %c0_i32 = arith.constant 0 : i32
    %c0_i32_0 = arith.constant 0 : i32
    %c0_i32_1 = arith.constant 0 : i32
    return %c0_i32, %c0_i32_0 : i32, i32
  }
  func.func @transform_2(%arg0: i32) -> (i32, i32, i32) {
    %c0_i32 = arith.constant 0 : i32
    %c0_i32_0 = arith.constant 0 : i32
    %c0_i32_1 = arith.constant 0 : i32
    return %arg0, %c0_i32, %c0_i32_0 : i32, i32, i32
  }
}

</mosaic_0001>

<llo_original>
// kernel: tpu_custom_call.1
$region0: #{tpu_custom_call.1}
  #allocation0 [shape = 'u32[]', space=smem, size = 0x4, offset = 0x4, fixed_abs, tag = 'smem constant byte address 0x4 - core index']
  #allocation1 [shape = 'u32[144,128]{1,0:T(1,128)}', space=vmem, size = 0x12000, scoped, tag = 'internal scratch']
  %s0 = inlined_call_operand.hbm [shape: bf16[16,32], index: 0, kind: input, shape index: {}]
  %s1 = inlined_call_operand.hbm [shape: bf16[16,32], index: 1, kind: input, shape index: {}]
  %s2 = inlined_call_operand.hbm [shape: f32[1,8,128], index: 2, kind: output, shape index: {}]
  %s3 = sld [smem:[#allocation0]]
  $region26: #{tpu_custom_call.1} parent=0
    _
  %s5 = ssub.s32 1, %s3
  %s6 = scalar_select 0, %s5, %s3
  $region1: #{tpu_custom_call.1} parent=0
    #allocation2 [shape = 'u8[4096]{0}', space=vmem, size = 0x1000, scoped, tag = 'input window, operand 0, single buffered']
    #allocation3 [shape = 's32[1]{0}', space=sflag, size = 0x4, scoped, tag = 'scoped memory for tpu_custom_call.1']
    #allocation4 [shape = 's32[1]{0}', space=sflag, size = 0x4, scoped, tag = 'scoped memory for tpu_custom_call.1']
    #allocation5 [shape = 'u8[4096]{0}', space=vmem, size = 0x1000, scoped, tag = 'input window, operand 1, single buffered']
    #allocation6 [shape = 's32[1]{0}', space=sflag, size = 0x4, scoped, tag = 'scoped memory for tpu_custom_call.1']
    #allocation7 [shape = 'u8[4096]{0}', space=vmem, size = 0x1000, scoped, tag = 'output window, operand 0, single buffered']
    %7 = vsyncpa [#allocation3], 0
    %8 = vsyncpa [#allocation6], 0
    %9 = vsyncpa [#allocation4], 0
    // Predicated region
    $region2: #{tpu_custom_call.1} parent=1 // pred_check
      _
    $region3: #{tpu_custom_call.1} parent=1 // pred_check_branch
      %11 = sbr.rel (0) target = $region5
    $region4: #{tpu_custom_call.1} parent=1 // pred_region
      %s13 = ssub.s32 128, 128
      %14 = vsyncadd [#allocation3], %s13
      %s15 = sshll.u32 [#allocation2], 4
      %s16 = int_to_ptr.vmem [resolvable:$true] %s15
      %21 = dma.hbm_to_vmem [thread:$0]  %s0, 128, %s16, [#allocation3], 64, 64, 4
    $region5: #{tpu_custom_call.1} parent=1 // pred_fallthru
      _
    // Predicated region
    $region6: #{tpu_custom_call.1} parent=1 // pred_check
      _
    $region7: #{tpu_custom_call.1} parent=1 // pred_check_branch
      %23 = sbr.rel (0) target = $region9
    $region8: #{tpu_custom_call.1} parent=1 // pred_region
      %s25 = ssub.s32 128, 128
      %26 = vsyncadd [#allocation6], %s25
      %s27 = sshll.u32 [#allocation5], 4
      %s28 = int_to_ptr.vmem [resolvable:$true] %s27
      %33 = dma.hbm_to_vmem [thread:$0]  %s1, 128, %s28, [#allocation6], 64, 64, 4
    $region9: #{tpu_custom_call.1} parent=1 // pred_fallthru
      _
    // Predicated region
    $region10: #{tpu_custom_call.1} parent=1 // pred_check
      _
    $region11: #{tpu_custom_call.1} parent=1 // pred_check_branch
      %35 = sbr.rel (0) target = $region13
    $region12: #{tpu_custom_call.1} parent=1 // pred_region
      %36 = dma.done [#allocation3], 128
    $region13: #{tpu_custom_call.1} parent=1 // pred_fallthru
      _
    // Predicated region
    $region14: #{tpu_custom_call.1} parent=1 // pred_check
      _
    $region15: #{tpu_custom_call.1} parent=1 // pred_check_branch
      %38 = sbr.rel (0) target = $region17
    $region16: #{tpu_custom_call.1} parent=1 // pred_region
      %39 = dma.done [#allocation6], 128
    $region17: #{tpu_custom_call.1} parent=1 // pred_fallthru
      _
    %s41 = smul.u32 0, 16
    %s42 = sshra.s32 %s41, 3
    %s43 = sand.u32 %s41, 7
    %s44 = smul.addr %s42, 4
    %s45 = scalar_lea.vmem [#allocation2], %s44
    %v46 = vld [vmem:[%s45] sm:$0xf]
    %v47 = vld [vmem:[%s45 + $0x4] sm:$0xf]
    %s48 = smul.addr %s42, 4
    %s49 = scalar_lea.vmem [#allocation5], %s48
    %v50 = vld [vmem:[%s49] sm:$0xf]
    %v51 = vld [vmem:[%s49 + $0x4] sm:$0xf]
    %v52 = vld [vmem:[#allocation5] sm:$0xf]
    %v53 = vld [vmem:[#allocation5 + $0x4] sm:$0xf]
    %v54 = vld [vmem:[#allocation2] sm:$0xf]
    %v55 = vld [vmem:[#allocation2 + $0x4] sm:$0xf]
    %v58 = vunpack.c.l.b16 %v46
    %v59 = vunpack.c.l.b16 %v47
    %v60 = vpack.c.b16 %v59, %v58
    %v63 = vunpack.c.l.b16 %v52
    %v64 = vunpack.c.l.b16 %v53
    %v65 = vpack.c.b16 %v64, %v63
    %vm66 = vcmask 261120
    %v68 = vsel %vm66, %v60, 0
    %v71 = vsel %vm66, %v65, 0
    %73 = vmatprep.subr.bf16.mxu0 0
    %74 = vmatpush1.bf16.xpose.msra.mxu0 %v71
    %75 = vmatprep.subr.bf16.mxu0 0
    %76 = vmatpush1.bf16.xpose.msra.mxu0 0
    %77 = vmatprep.subr.bf16.mxu0 0
    %78 = vmatpush1.bf16.xpose.msra.mxu0 0
    %79 = vmatprep.subr.bf16.mxu0 0
    %80 = vmatpush1.bf16.xpose.msra.mxu0 0
    %81 = vmatprep.subr.bf16.mxu0 0
    %82 = vmatpush1.bf16.xpose.msra.mxu0 0
    %83 = vmatprep.subr.bf16.mxu0 0
    %84 = vmatpush1.bf16.xpose.msra.mxu0 0
    %85 = vmatprep.subr.bf16.mxu0 0
    %86 = vmatpush1.bf16.xpose.msra.mxu0 0
    %87 = vmatprep.subr.bf16.mxu0 0
    %88 = vmatpush1.bf16.xpose.msra.mxu0 0
    %89 = vmatprep.subr.bf16.mxu0 0
    %90 = vmatpush1.bf16.xpose.msra.mxu0 0
    %91 = vmatprep.subr.bf16.mxu0 0
    %92 = vmatpush1.bf16.xpose.msra.mxu0 0
    %93 = vmatprep.subr.bf16.mxu0 0
    %94 = vmatpush1.bf16.xpose.msra.mxu0 0
    %95 = vmatprep.subr.bf16.mxu0 0
    %96 = vmatpush1.bf16.xpose.msra.mxu0 0
    %97 = vmatprep.subr.bf16.mxu0 0
    %98 = vmatpush1.bf16.xpose.msra.mxu0 0
    %99 = vmatprep.subr.bf16.mxu0 0
    %100 = vmatpush1.bf16.xpose.msra.mxu0 0
    %101 = vmatprep.subr.bf16.mxu0 0
    %102 = vmatpush1.bf16.xpose.msra.mxu0 0
    %103 = vmatprep.subr.bf16.mxu0 0
    %104 = vmatpush1.bf16.xpose.msra.mxu0 0
    %105 = vmatprep.mubr.bf16.mxu0 0
    %106 = vmatmul.mubr.bf16.gmra.mrb[0].mxu0 %v68
    %v107 = vpop.f32.mrb[0].mxu0
    %v108 = vadd.f32 0.0, %v107
    %v109 = vpop.f32.mrb[0].mxu0
    %v110 = vpop.f32.mrb[0].mxu0
    %v111 = vadd.f32 0.0, %v110
    %v112 = vpop.f32.mrb[0].mxu0
    %113 = vdwg.mxu0
    %v116 = vunpack.c.l.b16 %v50
    %v117 = vunpack.c.l.b16 %v51
    %v118 = vpack.c.b16 %v117, %v116
    %v121 = vunpack.c.l.b16 %v54
    %v122 = vunpack.c.l.b16 %v55
    %v123 = vpack.c.b16 %v122, %v121
    %v125 = vsel %vm66, %v118, 0
    %v128 = vsel %vm66, %v123, 0
    %130 = vmatprep.subr.bf16.mxu0 0
    %131 = vmatpush1.bf16.xpose.msra.mxu0 %v128
    %132 = vmatprep.subr.bf16.mxu0 0
    %133 = vmatpush1.bf16.xpose.msra.mxu0 0
    %134 = vmatprep.subr.bf16.mxu0 0
    %135 = vmatpush1.bf16.xpose.msra.mxu0 0
    %136 = vmatprep.subr.bf16.mxu0 0
    %137 = vmatpush1.bf16.xpose.msra.mxu0 0
    %138 = vmatprep.subr.bf16.mxu0 0
    %139 = vmatpush1.bf16.xpose.msra.mxu0 0
    %140 = vmatprep.subr.bf16.mxu0 0
    %141 = vmatpush1.bf16.xpose.msra.mxu0 0
    %142 = vmatprep.subr.bf16.mxu0 0
    %143 = vmatpush1.bf16.xpose.msra.mxu0 0
    %144 = vmatprep.subr.bf16.mxu0 0
    %145 = vmatpush1.bf16.xpose.msra.mxu0 0
    %146 = vmatprep.subr.bf16.mxu0 0
    %147 = vmatpush1.bf16.xpose.msra.mxu0 0
    %148 = vmatprep.subr.bf16.mxu0 0
    %149 = vmatpush1.bf16.xpose.msra.mxu0 0
    %150 = vmatprep.subr.bf16.mxu0 0
    %151 = vmatpush1.bf16.xpose.msra.mxu0 0
    %152 = vmatprep.subr.bf16.mxu0 0
    %153 = vmatpush1.bf16.xpose.msra.mxu0 0
    %154 = vmatprep.subr.bf16.mxu0 0
    %155 = vmatpush1.bf16.xpose.msra.mxu0 0
    %156 = vmatprep.subr.bf16.mxu0 0
    %157 = vmatpush1.bf16.xpose.msra.mxu0 0
    %158 = vmatprep.subr.bf16.mxu0 0
    %159 = vmatpush1.bf16.xpose.msra.mxu0 0
    %160 = vmatprep.subr.bf16.mxu0 0
    %161 = vmatpush1.bf16.xpose.msra.mxu0 0
    %162 = vmatprep.mubr.bf16.mxu0 0
    %163 = vmatmul.mubr.bf16.gmra.mrb[0].mxu0 %v125
    %v164 = vpop.f32.mrb[0].mxu0
    %v165 = vadd.f32 0.0, %v164
    %v166 = vpop.f32.mrb[0].mxu0
    %v167 = vpop.f32.mrb[0].mxu0
    %v168 = vadd.f32 0.0, %v167
    %v169 = vpop.f32.mrb[0].mxu0
    %170 = vdwg.mxu0
    %v171 = vmul.f32 %v108, 1.442695
    %v172 = vpow.pop %v171
    %v173 = vmul.f32 %v111, 1.442695
    %v174 = vpow.pop %v173
    %v175 = vmul.f32 %v165, 1.442695
    %v176 = vpow.pop %v175
    %v177 = vmul.f32 %v168, 1.442695
    %v178 = vpow.pop %v177
    %v179 = vlaneseq
    %v180 = vand.u32 %v179, 127
    %v181 = vstv 0
    %v182 = vadd.s32 %v180, %v181
    %vm183 = vcmp.lt.s32.totalorder %v182, 8
    %v184 = vsel %vm183, 1, 0
    %v185 = vcvt.s32.f32 %v184
    %v186 = vmul.f32 %v172, %v185
    %v187 = vmul.f32 %v174, %v185
    %v188 = vmul.f32 %v176, %v185
    %v189 = vmul.f32 %v178, %v185
    %vm190 = vcmask 130048
    %v191 = vsel %vm190, %v186, 0.0
    %192 = vadd.xlane.f32.xlu0 %v191
    %v193 = vpop.xlane.xlu0 %192
    %v194 = vsel %vm190, %v187, 0.0
    %195 = vadd.xlane.f32.xlu0 %v194
    %v196 = vpop.xlane.xlu0 %195
    %v197 = vadd.f32 %v193, 0.0
    %v198 = vadd.f32 %v196, 0.0
    %v199 = vsel %vm190, %v188, 0.0
    %200 = vadd.xlane.f32.xlu0 %v199
    %v201 = vpop.xlane.xlu0 %200
    %v202 = vsel %vm190, %v189, 0.0
    %203 = vadd.xlane.f32.xlu0 %v202
    %v204 = vpop.xlane.xlu0 %203
    %v205 = vadd.f32 %v201, 0.0
    %v206 = vadd.f32 %v204, 0.0
    %v207 = vsub.f32 %v165, %v108
    %v208 = vsub.f32 %v168, %v111
    %v209 = vmul.f32 %v188, %v207
    %v210 = vmul.f32 %v189, %v208
    %v211 = vsel %vm190, %v209, 0.0
    %212 = vadd.xlane.f32.xlu0 %v211
    %v213 = vpop.xlane.xlu0 %212
    %v214 = vsel %vm190, %v210, 0.0
    %215 = vadd.xlane.f32.xlu0 %v214
    %v216 = vpop.xlane.xlu0 %215
    %v217 = vadd.f32 %v213, 0.0
    %v218 = vadd.f32 %v216, 0.0
    %v219 = vrcp.pop %v205
    %v220 = vrcp.pop %v206
    %v221 = vmul.f32 %v217, %v219
    %v222 = vmul.f32 %v218, %v220
    %v223 = vlog2.pop %v197
    %v224 = vmul.f32 %v223, 0.6931472
    %v225 = vlog2.pop %v198
    %v226 = vmul.f32 %v225, 0.6931472
    %v227 = vadd.f32 %v221, %v224
    %v228 = vadd.f32 %v222, %v226
    %v229 = vlog2.pop %v205
    %v230 = vmul.f32 %v229, 0.6931472
    %v231 = vlog2.pop %v206
    %v232 = vmul.f32 %v231, 0.6931472
    %v233 = vsub.f32 %v227, %v230
    %v234 = vsub.f32 %v228, %v232
    %v235 = vlaneseq
    %v236 = vshrl.u32 %v235, 7
    %v237 = vadd.s32 %v236, 8
    %v238 = vstv %s41
    %v239 = vadd.s32 %v236, %v238
    %v240 = vadd.s32 %v237, %v238
    %vm241 = vcmp.lt.s32.totalorder %v239, 8
    %vm242 = vcmp.lt.s32.totalorder %v240, 8
    %v243 = vsel %vm241, %v233, 0.0
    %v244 = vsel %vm242, %v234, 0.0
    %vm245 = vcmask 7168
    %v246 = vsel %vm245, %v243, 0.0
    %v247 = vsel %vm245, %v244, 0.0
    %v248 = vadd.f32 %v246, %v247
    %249 = vadd.xlane.f32.xlu0 %v248
    %v250 = vpop.xlane.xlu0 %249
    %v251 = vrot.slane %v250, 4
    %v252 = vadd.f32 %v250, %v251
    %v253 = vrot.slane %v252, 2
    %v254 = vadd.f32 %v252, %v253
    %v255 = vrot.slane %v254, 1
    %v256 = vadd.f32 %v254, %v255
    %s257 = vtos %v256
    %s258 = smul.f32 %s257, 0.125
    %v259 = vstv %s258
    %260 = vst [vmem:[#allocation7] sm:$0xff] %v259
    // Predicated region
    $region18: #{tpu_custom_call.1} parent=1 // pred_check
      _
    $region19: #{tpu_custom_call.1} parent=1 // pred_check_branch
      %262 = sbr.rel (0) target = $region21
    $region20: #{tpu_custom_call.1} parent=1 // pred_region
      %s264 = ssub.s32 128, 128
      %265 = vsyncadd [#allocation4], %s264
      %s267 = sshll.u32 [#allocation7], 4
      %s268 = int_to_ptr.vmem [resolvable:$true] %s267
      %270 = dma.vmem_to_hbm [thread:$0]  %s268, 128, %s2, [#allocation4]
    $region21: #{tpu_custom_call.1} parent=1 // pred_fallthru
      _
    // Predicated region
    $region22: #{tpu_custom_call.1} parent=1 // pred_check
      _
    $region23: #{tpu_custom_call.1} parent=1 // pred_check_branch
      %272 = sbr.rel (0) target = $region25
    $region24: #{tpu_custom_call.1} parent=1 // pred_region
      %273 = dma.done [#allocation4], 128
    $region25: #{tpu_custom_call.1} parent=1 // pred_fallthru
      _
    %274 = vsyncpa [#allocation3], 1
    %275 = vsyncpa [#allocation6], 1
    %276 = vsyncpa [#allocation4], 1

</llo_original>
